<compile_context>
chip_gen: v7x
topology: tpu7x:2x2x1
jax: 0.10.0
libtpu: 0.0.40
codegen_flags: <defaults>
</compile_context>

<pallas_src>
import functools

import jax
import jax.numpy as jnp
from jax.experimental import pallas as pl
from jax.experimental.pallas import tpu as pltpu

LANES = 128
MAX_BLOCK_ROWS = 16384            # 16384 * 128 * 4 B = 8 MiB per f32 block
VMEM_LIMIT_BYTES = 40 << 20       # 2 inputs x 2 buffers x 8 MiB + headroom
SMALL_INPUT_BYTES = 256 * 1024    # below this, fused XLA beats a kernel launch


def _round_up(n, m):
    return ((n + m - 1) // m) * m


def _tensorcores_per_chip():
    """Best-effort TensorCore count per chip (2 on v7x, else 1)."""
    # TODO(synk): verify a size-2 "parallel" leading grid axis actually engages
    # both v7x TensorCores; switch to pltpu.CORE_PARALLEL / pl.core_map if
    # profiling shows the grid running on a single core.
    try:
        kind = jax.devices()[0].device_kind.lower()
        if "v7" in kind or "7x" in kind:
            return 2
    except Exception:
        pass
    return 1


def _content_loss_kernel(x_ref, t_ref, acc_ref, *,
                         block_rows, nb_inner, total_rows, needs_mask):
    c = pl.program_id(0)   # parallel (per-TensorCore) axis
    i = pl.program_id(1)   # reduction axis (last)

    @pl.when(i == 0)
    def _():
        acc_ref[...] = jnp.zeros_like(acc_ref)

    def diff():
        return x_ref[...].astype(jnp.float32) - t_ref[...].astype(jnp.float32)

    def block_sum(d):
        # (block_rows, 128) -> (block_rows//8, 8, 128): tile-aligned reshape;
        # the leading-axis sum is pure vreg-wise VPU adds into a single vreg.
        sq = d * d
        return jnp.sum(sq.reshape(-1, 8, LANES), axis=0)

    if needs_mask:
        # Unclamped block position (the index_map clamps to the last real
        # block, so out-of-range steps re-read valid data; using the
        # unclamped row_start guarantees their contribution masks to zero).
        row_start = (c * nb_inner + i) * block_rows
        is_edge = row_start + block_rows > total_rows

        @pl.when(jnp.logical_not(is_edge))
        def _():
            acc_ref[...] += block_sum(diff())

        @pl.when(is_edge)
        def _():
            d = diff()
            row_ids = jax.lax.broadcasted_iota(jnp.int32, d.shape, 0)
            # Mask (select, not multiply) BEFORE squaring, so garbage / NaN in
            # out-of-range rows cannot leak into the sum.
            d = jnp.where(row_start + row_ids < total_rows, d,
                          jnp.float32(0.0))
            acc_ref[...] += block_sum(d)
    else:
        acc_ref[...] += block_sum(diff())


def _mse_plain(x, target):
    d = x.astype(jnp.float32) - target.astype(jnp.float32)
    return jnp.mean(d * d)


def content_loss(x, target, *, force_pallas=False):
    """ContentLoss.forward: returns (input_passthrough, mse_loss_scalar)."""
    assert x.shape == target.shape, "input and target must match"
    n_elems = x.size
    rows = n_elems // LANES

    # Small-input fast path: a pallas_call launch + grid overhead dominates
    # below a few hundred KiB; plain fused XLA is faster and equivalent.
    small = n_elems * jnp.dtype(x.dtype).itemsize < SMALL_INPUT_BYTES
    if (small and not force_pallas) or rows == 0:
        return x, _mse_plain(x, target)

    xf = x.reshape(-1)
    tf = target.reshape(-1)

    # Ragged (<128-element) tail: reduce it in plain XLA instead of
    # zero-padding full copies of both operands.
    tail = n_elems - rows * LANES
    if tail:
        tail_sum = jnp.sum(
            (xf[rows * LANES:].astype(jnp.float32)
             - tf[rows * LANES:].astype(jnp.float32)) ** 2)
        # TODO(synk): the head slice may materialize a copy; only hit on the
        # rare n % 128 != 0 path.
        xf = xf[: rows * LANES]
        tf = tf[: rows * LANES]
    else:
        tail_sum = jnp.float32(0.0)

    x2d = xf.reshape(rows, LANES)    # free reshape (contiguous)
    t2d = tf.reshape(rows, LANES)

    # Block rows: multiple of 8 (so the in-kernel (-1, 8, 128) reshape is
    # tile-aligned); full extent for small inputs, 8 MiB blocks otherwise.
    block_rows = min(MAX_BLOCK_ROWS, _round_up(rows, 8))

    nb = pl.cdiv(rows, block_rows)                   # row-blocks total
    num_cores = min(_tensorcores_per_chip(), nb)     # don't over-split tiny grids
    nb_inner = pl.cdiv(nb, num_cores)                # row-blocks per core
    needs_mask = (num_cores * nb_inner * block_rows) != rows

    if needs_mask:
        def in_map(c, i):
            # Clamp so fully-out-of-range steps re-read the last real block;
            # their contribution is masked to zero inside the kernel.
            return (jnp.minimum(c * nb_inner + i, nb - 1), 0)
    else:
        def in_map(c, i):
            return (c * nb_inner + i, 0)

    kernel = functools.partial(
        _content_loss_kernel,
        block_rows=block_rows,
        nb_inner=nb_inner,
        total_rows=rows,
        needs_mask=needs_mask,
    )

    itemsize = jnp.dtype(x.dtype).itemsize
    partials = pl.pallas_call(
        kernel,
        out_shape=jax.ShapeDtypeStruct((num_cores * 8, LANES), jnp.float32),
        grid_spec=pltpu.PrefetchScalarGridSpec(
            num_scalar_prefetch=0,
            grid=(num_cores, nb_inner),
            in_specs=[
                pl.BlockSpec((block_rows, LANES), in_map),
                pl.BlockSpec((block_rows, LANES), in_map),
            ],
            # Output block doubles as the per-core accumulator: same (8, 128)
            # block across the whole reduction axis.
            out_specs=pl.BlockSpec((8, LANES), lambda c, i: (c, 0)),
        ),
        compiler_params=pltpu.CompilerParams(
            dimension_semantics=("parallel", "arbitrary"),
            vmem_limit_bytes=VMEM_LIMIT_BYTES,
        ),
        cost_estimate=pl.CostEstimate(
            flops=3 * n_elems,
            transcendentals=0,
            bytes_accessed=2 * n_elems * itemsize + num_cores * 8 * LANES * 4,
        ),
    )(x2d, t2d)

    loss = (jnp.sum(partials) + tail_sum) / n_elems

    # ContentLoss.forward returns its input unchanged; no kernel pass-through
    # write is needed (saves 1/3 of the HBM traffic).
    # TODO(synk): the PyTorch module stashes the loss on `self.loss` (stateful
    # side effect); here it is returned as a second output instead.
    return x, loss


if __name__ == "__main__":
    key = jax.random.PRNGKey(0)
    kx, kt, ka, kb = jax.random.split(key, 4)

    # Canonical small NCHW feature map: batch=2, channels=4, spatial=16.
    x = jax.random.normal(kx, (2, 4, 16, 16), dtype=jnp.float32)
    target = jax.random.normal(kt, (2, 4, 16, 16), dtype=jnp.float32)
    ref_loss = jnp.mean((x - target) ** 2)

    # 1) Pallas kernel path (forced, since this input is below the fast-path
    #    threshold) -- exercises the clean, unmasked kernel.
    y, loss = content_loss(x, target, force_pallas=True)
    jax.block_until_ready((y, loss))
    assert jnp.allclose(y, x), "pass-through output mismatch"
    assert jnp.allclose(loss, ref_loss, rtol=1e-5, atol=1e-6), (
        f"loss mismatch: {loss} vs {ref_loss}")

    # 2) Default (auto) dispatch at the same small shape -> plain-XLA fast path.
    y2, loss2 = content_loss(x, target)
    jax.block_until_ready((y2, loss2))
    assert jnp.allclose(loss2, ref_loss, rtol=1e-5, atol=1e-6)

    # 3) Ragged shape (n % 128 != 0), forced -> exercises the masked edge block
    #    and the plain-XLA tail.
    xr = jax.random.normal(ka, (3, 5, 7, 11), dtype=jnp.float32)
    tr = jax.random.normal(kb, (3, 5, 7, 11), dtype=jnp.float32)
    yr, loss_r = content_loss(xr, tr, force_pallas=True)
    jax.block_until_ready((yr, loss_r))
    ref_r = jnp.mean((xr - tr) ** 2)
    assert jnp.allclose(yr, xr)
    assert jnp.allclose(loss_r, ref_r, rtol=1e-5, atol=1e-6), (
        f"ragged loss mismatch: {loss_r} vs {ref_r}")

    print("KERNEL_OK")
</pallas_src>

<mosaic_0001>
module attributes {stable_mosaic.version = 11 : i64} {
  func.func @_content_loss_kernel(%arg0: i32, %arg1: i32, %arg2: memref<16x128xf32, #tpu.memory_space<vmem>>, %arg3: memref<16x128xf32, #tpu.memory_space<vmem>>, %arg4: memref<8x128xf32, #tpu.memory_space<vmem>>) attributes {dimension_semantics = [#tpu.dimension_semantics<parallel>, #tpu.dimension_semantics<arbitrary>], iteration_bounds = array<i64: 1, 1>, scalar_prefetch = 0 : i64, scratch_operands = 0 : i64, tpu.core_type = #tpu.core_type<tc>, window_params = [{transform_indices = @transform_0, window_bounds = array<i64: 16, 128>}, {transform_indices = @transform_1, window_bounds = array<i64: 16, 128>}, {transform_indices = @transform_2, window_bounds = array<i64: 8, 128>}]} {
    %c0_i32 = arith.constant 0 : i32
    %0 = arith.cmpi eq, %arg1, %c0_i32 : i32
    %1 = arith.extui %0 : i1 to i32
    %c0_i32_0 = arith.constant 0 : i32
    %2 = arith.cmpi ne, %1, %c0_i32_0 : i32
    scf.if %2 {
      %cst_8 = arith.constant 0.000000e+00 : f32
      %12 = vector.broadcast %cst_8 : f32 to vector<8x128xf32>
      %c0_9 = arith.constant 0 : index
      %c0_10 = arith.constant 0 : index
      %13 = vector.load %arg4[%c0_9, %c0_10] : memref<8x128xf32, #tpu.memory_space<vmem>>, vector<8x128xf32>
      tpu.vector_store %arg4[%c0_9, %c0_10], %12 {strides = array<i32>} : memref<8x128xf32, #tpu.memory_space<vmem>>, vector<8x128xf32>,
    } else {
    }
    %c0 = arith.constant 0 : index
    %c0_1 = arith.constant 0 : index
    %3 = vector.load %arg4[%c0, %c0_1] : memref<8x128xf32, #tpu.memory_space<vmem>>, vector<8x128xf32>
    %c0_2 = arith.constant 0 : index
    %c0_3 = arith.constant 0 : index
    %4 = vector.load %arg2[%c0_2, %c0_3] : memref<16x128xf32, #tpu.memory_space<vmem>>, vector<16x128xf32>
    %c0_4 = arith.constant 0 : index
    %c0_5 = arith.constant 0 : index
    %5 = vector.load %arg3[%c0_4, %c0_5] : memref<16x128xf32, #tpu.memory_space<vmem>>, vector<16x128xf32>
    %6 = arith.subf %4, %5 : vector<16x128xf32>
    %7 = arith.mulf %6, %6 : vector<16x128xf32>
    %8 = vector.shape_cast %7 : vector<16x128xf32> to vector<2x8x128xf32>
    %cst = arith.constant dense<0.000000e+00> : vector<8x128xf32>
    %9 = vector.multi_reduction <add>, %8, %cst [0] : vector<2x8x128xf32> to vector<8x128xf32>
    %10 = arith.addf %3, %9 : vector<8x128xf32>
    %c0_6 = arith.constant 0 : index
    %c0_7 = arith.constant 0 : index
    %11 = vector.load %arg4[%c0_6, %c0_7] : memref<8x128xf32, #tpu.memory_space<vmem>>, vector<8x128xf32>
    tpu.vector_store %arg4[%c0_6, %c0_7], %10 {strides = array<i32>} : memref<8x128xf32, #tpu.memory_space<vmem>>, vector<8x128xf32>,
    return
  }
  func.func @transform_0(%arg0: i32, %arg1: i32) -> (i32, i32) {
    %c1_i32 = arith.constant 1 : i32
    %0 = arith.muli %arg0, %c1_i32 : i32
    %1 = arith.addi %0, %arg1 : i32
    %c0_i32 = arith.constant 0 : i32
    %c0_i32_0 = arith.constant 0 : i32
    return %1, %c0_i32 : i32, i32
  }
  func.func @transform_1(%arg0: i32, %arg1: i32) -> (i32, i32) {
    %c1_i32 = arith.constant 1 : i32
    %0 = arith.muli %arg0, %c1_i32 : i32
    %1 = arith.addi %0, %arg1 : i32
    %c0_i32 = arith.constant 0 : i32
    %c0_i32_0 = arith.constant 0 : i32
    return %1, %c0_i32 : i32, i32
  }
  func.func @transform_2(%arg0: i32, %arg1: i32) -> (i32, i32) {
    %c0_i32 = arith.constant 0 : i32
    %c0_i32_0 = arith.constant 0 : i32
    return %arg0, %c0_i32 : i32, i32
  }
}

</mosaic_0001>

<llo_original>
// kernel: tpu_custom_call.1
$region0: #{tpu_custom_call.1}
  #allocation0 [shape = 'u32[]', space=smem, size = 0x4, offset = 0x4, fixed_abs, tag = 'smem constant byte address 0x4 - core index']
  #allocation1 [shape = 'u32[144,128]{1,0:T(1,128)}', space=vmem, size = 0x12000, scoped, tag = 'internal scratch']
  %s0 = inlined_call_operand.hbm [shape: f32[16,128], index: 0, kind: input, shape index: {}]
  %s1 = inlined_call_operand.hbm [shape: f32[16,128], index: 1, kind: input, shape index: {}]
  %s2 = inlined_call_operand.hbm [shape: f32[8,128], index: 2, kind: output, shape index: {}]
  %s3 = sld [smem:[#allocation0]]
  $region30: #{tpu_custom_call.1} parent=0
    _
  %s5 = ssub.s32 1, %s3
  %s6 = scalar_select 0, %s5, %s3
  $region1: #{tpu_custom_call.1} parent=0
    #allocation2 [shape = 'u8[8192]{0}', space=vmem, size = 0x2000, scoped, tag = 'input window, operand 0, single buffered']
    #allocation3 [shape = 's32[1]{0}', space=sflag, size = 0x4, scoped, tag = 'scoped memory for tpu_custom_call.1']
    #allocation4 [shape = 's32[1]{0}', space=sflag, size = 0x4, scoped, tag = 'scoped memory for tpu_custom_call.1']
    #allocation5 [shape = 'u8[8192]{0}', space=vmem, size = 0x2000, scoped, tag = 'input window, operand 1, single buffered']
    #allocation6 [shape = 's32[1]{0}', space=sflag, size = 0x4, scoped, tag = 'scoped memory for tpu_custom_call.1']
    #allocation7 [shape = 'u8[4096]{0}', space=vmem, size = 0x1000, scoped, tag = 'output window, operand 0, single buffered']
    %7 = vsyncpa [#allocation3], 0
    %8 = vsyncpa [#allocation6], 0
    %9 = vsyncpa [#allocation4], 0
    // Predicated region
    $region2: #{tpu_custom_call.1} parent=1 // pred_check
      _
    $region3: #{tpu_custom_call.1} parent=1 // pred_check_branch
      %11 = sbr.rel (0) target = $region5
    $region4: #{tpu_custom_call.1} parent=1 // pred_region
      %s12 = sadd.s32 0, 0
      %s13 = smul.u32 2, %s12
      %s15 = ssub.s32 256, 256
      %16 = vsyncadd [#allocation3], %s15
      %s17 = smul.addr %s13, 128
      %s18 = scalar_lea.hbm %s0, %s17
      %s19 = sshll.u32 [#allocation2], 4
      %s20 = int_to_ptr.vmem [resolvable:$true] %s19
      %25 = dma.hbm_to_vmem [thread:$0]  %s18, 256, %s20, [#allocation3], 128, 128, 8
    $region5: #{tpu_custom_call.1} parent=1 // pred_fallthru
      _
    // Predicated region
    $region6: #{tpu_custom_call.1} parent=1 // pred_check
      _
    $region7: #{tpu_custom_call.1} parent=1 // pred_check_branch
      %27 = sbr.rel (0) target = $region9
    $region8: #{tpu_custom_call.1} parent=1 // pred_region
      %s28 = sadd.s32 0, 0
      %s29 = smul.u32 2, %s28
      %s31 = ssub.s32 256, 256
      %32 = vsyncadd [#allocation6], %s31
      %s33 = smul.addr %s29, 128
      %s34 = scalar_lea.hbm %s1, %s33
      %s35 = sshll.u32 [#allocation5], 4
      %s36 = int_to_ptr.vmem [resolvable:$true] %s35
      %41 = dma.hbm_to_vmem [thread:$0]  %s34, 256, %s36, [#allocation6], 128, 128, 8
    $region9: #{tpu_custom_call.1} parent=1 // pred_fallthru
      _
    // Predicated region
    $region10: #{tpu_custom_call.1} parent=1 // pred_check
      _
    $region11: #{tpu_custom_call.1} parent=1 // pred_check_branch
      %43 = sbr.rel (0) target = $region13
    $region12: #{tpu_custom_call.1} parent=1 // pred_region
      %44 = dma.done [#allocation3], 256
    $region13: #{tpu_custom_call.1} parent=1 // pred_fallthru
      _
    // Predicated region
    $region14: #{tpu_custom_call.1} parent=1 // pred_check
      _
    $region15: #{tpu_custom_call.1} parent=1 // pred_check_branch
      %46 = sbr.rel (0) target = $region17
    $region16: #{tpu_custom_call.1} parent=1 // pred_region
      %47 = dma.done [#allocation6], 256
    $region17: #{tpu_custom_call.1} parent=1 // pred_fallthru
      _
    %s48 = sadd.s32 0, 0
    %s49 = smul.u32 2, %s48
    %s50 = sadd.s32 0, 0
    %s51 = smul.u32 2, %s50
    %p52 = scmp.eq.s32.totalorder 0, 0
    // Predicated region
    $region18: #{tpu_custom_call.1} parent=1 // pred_check
      %p53 = pneg %p52
    $region19: #{tpu_custom_call.1} parent=1 // pred_check_branch
      %55 = sbr.rel (%p53) target = $region21
    $region20: #{tpu_custom_call.1} parent=1 // pred_region
      %56 = vst [vmem:[#allocation7] sm:$0xff] 0.0
    $region21: #{tpu_custom_call.1} parent=1 // pred_fallthru
      _
    %v57 = vld [vmem:[#allocation7] sm:$0xff]
    %v58 = vld [vmem:[#allocation2] sm:$0xff]
    %v59 = vld [vmem:[#allocation2 + $0x8] sm:$0xff]
    %v60 = vld [vmem:[#allocation5] sm:$0xff]
    %v61 = vld [vmem:[#allocation5 + $0x8] sm:$0xff]
    %v62 = vsub.f32 %v58, %v60
    %v63 = vsub.f32 %v59, %v61
    %v64 = vmul.f32 %v62, %v62
    %v65 = vmul.f32 %v63, %v63
    %v66 = vadd.f32 %v64, %v65
    %v67 = vadd.f32 %v57, %v66
    %68 = vst [vmem:[#allocation7] sm:$0xff] %v67
    // Predicated region
    $region22: #{tpu_custom_call.1} parent=1 // pred_check
      _
    $region23: #{tpu_custom_call.1} parent=1 // pred_check_branch
      %70 = sbr.rel (0) target = $region25
    $region24: #{tpu_custom_call.1} parent=1 // pred_region
      %s72 = ssub.s32 128, 128
      %73 = vsyncadd [#allocation4], %s72
      %s75 = sshll.u32 [#allocation7], 4
      %s76 = int_to_ptr.vmem [resolvable:$true] %s75
      %78 = dma.vmem_to_hbm [thread:$0]  %s76, 128, %s2, [#allocation4]
    $region25: #{tpu_custom_call.1} parent=1 // pred_fallthru
      _
    // Predicated region
    $region26: #{tpu_custom_call.1} parent=1 // pred_check
      _
    $region27: #{tpu_custom_call.1} parent=1 // pred_check_branch
      %80 = sbr.rel (0) target = $region29
    $region28: #{tpu_custom_call.1} parent=1 // pred_region
      %81 = dma.done [#allocation4], 128
    $region29: #{tpu_custom_call.1} parent=1 // pred_fallthru
      _
    %82 = vsyncpa [#allocation3], 1
    %83 = vsyncpa [#allocation6], 1
    %84 = vsyncpa [#allocation4], 1

</llo_original>
